<compile_context>
chip_gen: v6e
topology: v6e:2x2x1
jax: 0.10.0
libtpu: 0.0.40
codegen_flags: <defaults>
</compile_context>

<pallas_src>
import jax
import jax.numpy as jnp
from jax import lax
from jax.experimental import pallas as pl
from jax.experimental.pallas import tpu as pltpu

_LANE_TILE = 128
_TIME_TILE = 512  # output rows per grid step (multiple of 8)


def _moving_avg_kernel(a_ref, x_ref, o_ref):
    # a_ref: (TQ, L)    f32 banded averaging matrix tile (folds pad/stride/1-over-K)
    # x_ref: (L, LANE)  one 128-wide lane group, full time axis
    # o_ref: (TQ, LANE)
    o_ref[...] = jnp.dot(
        a_ref[...],
        x_ref[...].astype(jnp.float32),
        precision=lax.Precision.HIGHEST,
        preferred_element_type=jnp.float32,
    ).astype(o_ref.dtype)


def _round_up(n, m):
    return ((n + m - 1) // m) * m


def _build_avg_matrix(L, L_out_pad, kernel_size, stride, pad):
    """A[t, j] = (#taps of output window t that read original row j) / K.

    Edge replication means padded position p maps to clip(p - pad, 0, L-1),
    so boundary rows simply receive multiple counts.
    """
    t = jnp.arange(L_out_pad, dtype=jnp.int32)
    k = jnp.arange(kernel_size, dtype=jnp.int32)
    src = jnp.clip(t[:, None] * stride + k[None, :] - pad, 0, L - 1)  # (L_out_pad, K)
    rows = jnp.broadcast_to(t[:, None], src.shape).reshape(-1)
    cols = src.reshape(-1)
    a = jnp.zeros((L_out_pad, L), jnp.float32)
    return a.at[rows, cols].add(1.0 / kernel_size)


def moving_avg(x, kernel_size, stride):
    """Exact equivalent of the PyTorch moving_avg.forward for x of shape (B, L, C)."""
    assert kernel_size >= 1 and stride >= 1
    B, L, C = x.shape
    pad = (kernel_size - 1) // 2
    L_padded = L + 2 * pad
    L_out = (L_padded - kernel_size) // stride + 1

    # Lane-dense relayout (layout plumbing only): (B, L, C) -> (L, B*C),
    # lane axis zero-padded up to a multiple of 128.
    nl = B * C
    nl_pad = _round_up(nl, _LANE_TILE)
    x2 = jnp.transpose(x, (1, 0, 2)).reshape(L, nl)
    if nl_pad != nl:
        x2 = jnp.pad(x2, ((0, 0), (0, nl_pad - nl)))

    # Output-time tiling: gives grid extent for megacore and bounds per-step VMEM.
    tq = L_out if L_out <= _TIME_TILE else _TIME_TILE
    n_t = pl.cdiv(L_out, tq)
    L_out_pad = n_t * tq            # pad A / out rows so every block is full
    n_lane = nl_pad // _LANE_TILE

    a_mat = _build_avg_matrix(L, L_out_pad, kernel_size, stride, pad)

    # VMEM budget from the shapes: double-buffered A, x and out blocks + headroom.
    x_bytes = jnp.dtype(x.dtype).itemsize
    need = (2 * tq * L * 4
            + 2 * L * _LANE_TILE * x_bytes
            + 2 * tq * _LANE_TILE * x_bytes)
    try:
        vmem_cap = pltpu.get_tpu_info().vmem_capacity_bytes
    except Exception:
        vmem_cap = 64 * 1024 * 1024   # conservative (v7x-sized) fallback
    vmem_limit = min(max(need + 4 * 1024 * 1024, 16 * 1024 * 1024),
                     int(vmem_cap * 0.85))

    out2 = pl.pallas_call(
        _moving_avg_kernel,
        out_shape=jax.ShapeDtypeStruct((L_out_pad, nl_pad), x.dtype),
        grid=(n_t, n_lane),
        in_specs=[
            # A tile: changes only with the time tile -> resident across the
            # inner lane-group axis.
            pl.BlockSpec((tq, L), lambda t, j: (t, 0)),
            # x lane group: full time axis per block.
            pl.BlockSpec((L, _LANE_TILE), lambda t, j: (0, j)),
        ],
        out_specs=pl.BlockSpec((tq, _LANE_TILE), lambda t, j: (t, j)),
        compiler_params=pltpu.CompilerParams(
            dimension_semantics=("parallel", "parallel"),
            vmem_limit_bytes=vmem_limit,
        ),
    )(a_mat, x2)

    # Undo the relayout: (L_out_pad, nl_pad) -> (B, L_out, C).
    out = out2[:L_out, :nl].reshape(L_out, B, C).transpose(1, 0, 2)
    return out


def _reference(x, kernel_size, stride):
    """Pure-JAX reference mirroring the PyTorch forward, for verification."""
    B, L, C = x.shape
    pad = (kernel_size - 1) // 2
    front = jnp.broadcast_to(x[:, 0:1, :], (B, pad, C))
    end = jnp.broadcast_to(x[:, -1:, :], (B, pad, C))
    xp = jnp.concatenate([front, x, end], axis=1)
    L_out = (xp.shape[1] - kernel_size) // stride + 1
    windows = jnp.stack(
        [xp[:, t * stride:t * stride + kernel_size, :] for t in range(L_out)], axis=1
    )  # (B, L_out, K, C)
    return jnp.mean(windows, axis=2)


if __name__ == "__main__":
    key = jax.random.PRNGKey(0)
    configs = [
        # (kernel_size, stride, shape)
        (5, 1, (2, 16, 8)),     # Autoformer default-style config, tiny shape
        (4, 2, (2, 16, 8)),     # even kernel + stride > 1
        (25, 1, (2, 600, 8)),   # exercises the multi-time-tile (halo-free) grid path
    ]
    for i, (ks, st, shape) in enumerate(configs):
        x = jax.random.normal(jax.random.fold_in(key, i), shape, dtype=jnp.float32)
        out = jax.block_until_ready(moving_avg(x, ks, st))
        ref = _reference(x, ks, st)
        assert out.shape == ref.shape, (out.shape, ref.shape)
        assert jnp.allclose(out, ref, atol=1e-5, rtol=1e-5), \
            f"mismatch vs reference for config K={ks}, S={st}, shape={shape}"

    print("KERNEL_OK")
</pallas_src>

<mosaic_0001>
module attributes {stable_mosaic.version = 11 : i64} {
  func.func @_moving_avg_kernel(%arg0: i32, %arg1: i32, %arg2: memref<16x16xf32, #tpu.memory_space<vmem>>, %arg3: memref<16x128xf32, #tpu.memory_space<vmem>>, %arg4: memref<16x128xf32, #tpu.memory_space<vmem>>) attributes {dimension_semantics = [#tpu.dimension_semantics<parallel>, #tpu.dimension_semantics<parallel>], iteration_bounds = array<i64: 1, 1>, scalar_prefetch = 0 : i64, scratch_operands = 0 : i64, tpu.core_type = #tpu.core_type<tc>, window_params = [{transform_indices = @transform_0, window_bounds = array<i64: 16, 16>}, {transform_indices = @transform_1, window_bounds = array<i64: 16, 128>}, {transform_indices = @transform_2, window_bounds = array<i64: 16, 128>}]} {
    %c0 = arith.constant 0 : index
    %c0_0 = arith.constant 0 : index
    %0 = vector.load %arg2[%c0, %c0_0] : memref<16x16xf32, #tpu.memory_space<vmem>>, vector<16x16xf32>
    %c0_1 = arith.constant 0 : index
    %c0_2 = arith.constant 0 : index
    %1 = vector.load %arg3[%c0_1, %c0_2] : memref<16x128xf32, #tpu.memory_space<vmem>>, vector<16x128xf32>
    %cst = arith.constant dense<0.000000e+00> : vector<16x128xf32>
    %2 = tpu.matmul %0, %1, %cst {dimension_numbers = #tpu.dot_dimension_numbers<[1], [0], [0], [1], [0, 0, 1, 1], [], []>, precision = #tpu.contract_precision<fp32>} : vector<16x16xf32>, vector<16x128xf32>, vector<16x128xf32> -> vector<16x128xf32>
    %c0_3 = arith.constant 0 : index
    %c0_4 = arith.constant 0 : index
    %3 = vector.load %arg4[%c0_3, %c0_4] : memref<16x128xf32, #tpu.memory_space<vmem>>, vector<16x128xf32>
    tpu.vector_store %arg4[%c0_3, %c0_4], %2 {strides = array<i32>} : memref<16x128xf32, #tpu.memory_space<vmem>>, vector<16x128xf32>,
    return
  }
  func.func @transform_0(%arg0: i32, %arg1: i32) -> (i32, i32) {
    %c0_i32 = arith.constant 0 : i32
    %c0_i32_0 = arith.constant 0 : i32
    return %arg0, %c0_i32 : i32, i32
  }
  func.func @transform_1(%arg0: i32, %arg1: i32) -> (i32, i32) {
    %c0_i32 = arith.constant 0 : i32
    %c0_i32_0 = arith.constant 0 : i32
    return %c0_i32, %arg1 : i32, i32
  }
  func.func @transform_2(%arg0: i32, %arg1: i32) -> (i32, i32) {
    %c0_i32 = arith.constant 0 : i32
    return %arg0, %arg1 : i32, i32
  }
}

</mosaic_0001>

<llo_original>
// kernel: tpu_custom_call.1
$region0: #{tpu_custom_call.1}
  #allocation0 [shape = 'u32[]', space=smem, size = 0x4, offset = 0x4, fixed_abs, tag = 'smem constant byte address 0x4 - core index']
  #allocation1 [shape = 'u32[144,128]{1,0:T(1,128)}', space=vmem, size = 0x12000, scoped, tag = 'internal scratch']
  %s0 = inlined_call_operand.hbm [shape: f32[16,16], index: 0, kind: input, shape index: {}]
  %s1 = inlined_call_operand.hbm [shape: f32[16,128], index: 1, kind: input, shape index: {}]
  %s2 = inlined_call_operand.hbm [shape: f32[16,128], index: 2, kind: output, shape index: {}]
  %s3 = sld [smem:[#allocation0]]
  $region26: #{tpu_custom_call.1} parent=0
    _
  %s5 = ssub.s32 1, %s3
  %s6 = scalar_select 0, %s5, %s3
  $region1: #{tpu_custom_call.1} parent=0
    #allocation2 [shape = 'u8[8192]{0}', space=vmem, size = 0x2000, scoped, tag = 'input window, operand 0, single buffered']
    #allocation3 [shape = 's32[1]{0}', space=sflag, size = 0x4, scoped, tag = 'scoped memory for tpu_custom_call.1']
    #allocation4 [shape = 's32[1]{0}', space=sflag, size = 0x4, scoped, tag = 'scoped memory for tpu_custom_call.1']
    #allocation5 [shape = 'u8[8192]{0}', space=vmem, size = 0x2000, scoped, tag = 'input window, operand 1, single buffered']
    #allocation6 [shape = 's32[1]{0}', space=sflag, size = 0x4, scoped, tag = 'scoped memory for tpu_custom_call.1']
    #allocation7 [shape = 'u8[8192]{0}', space=vmem, size = 0x2000, scoped, tag = 'output window, operand 0, single buffered']
    %7 = vsyncpa [#allocation3], 0
    %8 = vsyncpa [#allocation6], 0
    %9 = vsyncpa [#allocation4], 0
    // Predicated region
    $region2: #{tpu_custom_call.1} parent=1 // pred_check
      _
    $region3: #{tpu_custom_call.1} parent=1 // pred_check_branch
      %11 = sbr.rel (0) target = $region5
    $region4: #{tpu_custom_call.1} parent=1 // pred_region
      %s13 = ssub.s32 256, 256
      %14 = vsyncadd [#allocation3], %s13
      %s15 = sshll.u32 [#allocation2], 4
      %s16 = int_to_ptr.vmem [resolvable:$true] %s15
      %21 = dma.hbm_to_vmem [thread:$0]  %s0, 256, %s16, [#allocation3], 128, 128, 8
    $region5: #{tpu_custom_call.1} parent=1 // pred_fallthru
      _
    // Predicated region
    $region6: #{tpu_custom_call.1} parent=1 // pred_check
      _
    $region7: #{tpu_custom_call.1} parent=1 // pred_check_branch
      %23 = sbr.rel (0) target = $region9
    $region8: #{tpu_custom_call.1} parent=1 // pred_region
      %s25 = ssub.s32 256, 256
      %26 = vsyncadd [#allocation6], %s25
      %s27 = sshll.u32 [#allocation5], 4
      %s28 = int_to_ptr.vmem [resolvable:$true] %s27
      %33 = dma.hbm_to_vmem [thread:$0]  %s1, 256, %s28, [#allocation6], 128, 128, 8
    $region9: #{tpu_custom_call.1} parent=1 // pred_fallthru
      _
    // Predicated region
    $region10: #{tpu_custom_call.1} parent=1 // pred_check
      _
    $region11: #{tpu_custom_call.1} parent=1 // pred_check_branch
      %35 = sbr.rel (0) target = $region13
    $region12: #{tpu_custom_call.1} parent=1 // pred_region
      %36 = dma.done [#allocation3], 256
    $region13: #{tpu_custom_call.1} parent=1 // pred_fallthru
      _
    // Predicated region
    $region14: #{tpu_custom_call.1} parent=1 // pred_check
      _
    $region15: #{tpu_custom_call.1} parent=1 // pred_check_branch
      %38 = sbr.rel (0) target = $region17
    $region16: #{tpu_custom_call.1} parent=1 // pred_region
      %39 = dma.done [#allocation6], 256
    $region17: #{tpu_custom_call.1} parent=1 // pred_fallthru
      _
    %v40 = vld [vmem:[#allocation2] sm:$0xff]
    %v41 = vld [vmem:[#allocation2 + $0x8] sm:$0xff]
    %v42 = vld [vmem:[#allocation5] sm:$0xff]
    %v43 = vld [vmem:[#allocation5 + $0x8] sm:$0xff]
    %vm44 = vcmask 130048
    %v46 = vsel %vm44, %v40, 0
    %v49 = vsel %vm44, %v41, 0
    %51 = vmatprep.subr.mxu0 0.0
    %52 = vmatpush1.msra.mxu0 0.0
    %53 = vmatprep.subr.mxu0 0.0
    %54 = vmatpush1.msra.mxu0 0.0
    %55 = vmatprep.subr.mxu0 0.0
    %56 = vmatpush1.msra.mxu0 0.0
    %57 = vmatprep.subr.mxu0 0.0
    %58 = vmatpush1.msra.mxu0 0.0
    %59 = vmatprep.subr.mxu0 0.0
    %60 = vmatpush1.msra.mxu0 0.0
    %61 = vmatprep.subr.mxu0 0.0
    %62 = vmatpush1.msra.mxu0 0.0
    %63 = vmatprep.subr.mxu0 0.0
    %64 = vmatpush1.msra.mxu0 0.0
    %65 = vmatprep.subr.mxu0 0.0
    %66 = vmatpush1.msra.mxu0 0.0
    %67 = vmatprep.subr.mxu0 0.0
    %68 = vmatpush1.msra.mxu0 0.0
    %69 = vmatprep.subr.mxu0 0.0
    %70 = vmatpush1.msra.mxu0 0.0
    %71 = vmatprep.subr.mxu0 0.0
    %72 = vmatpush1.msra.mxu0 0.0
    %73 = vmatprep.subr.mxu0 0.0
    %74 = vmatpush1.msra.mxu0 0.0
    %75 = vmatprep.subr.mxu0 0.0
    %76 = vmatpush1.msra.mxu0 0.0
    %77 = vmatprep.subr.mxu0 0.0
    %78 = vmatpush1.msra.mxu0 0.0
    %79 = vmatprep.subr.mxu0 0.0
    %v80 = vand.u32 %v43, 4294901760
    %81 = vmatpush1.msra.mxu0 %v80
    %82 = vmatprep.subr.mxu0 0.0
    %v83 = vand.u32 %v42, 4294901760
    %84 = vmatpush1.msra.mxu0 %v83
    %85 = vmatprep.subr.mxu0 0.0
    %86 = vmatpush2.msra.mxu0 0.0
    %87 = vmatprep.subr.mxu0 0.0
    %88 = vmatpush2.msra.mxu0 0.0
    %89 = vmatprep.subr.mxu0 0.0
    %90 = vmatpush2.msra.mxu0 0.0
    %91 = vmatprep.subr.mxu0 0.0
    %92 = vmatpush2.msra.mxu0 0.0
    %93 = vmatprep.subr.mxu0 0.0
    %94 = vmatpush2.msra.mxu0 0.0
    %95 = vmatprep.subr.mxu0 0.0
    %96 = vmatpush2.msra.mxu0 0.0
    %97 = vmatprep.subr.mxu0 0.0
    %98 = vmatpush2.msra.mxu0 0.0
    %99 = vmatprep.subr.mxu0 0.0
    %100 = vmatpush2.msra.mxu0 0.0
    %101 = vmatprep.subr.mxu0 0.0
    %102 = vmatpush2.msra.mxu0 0.0
    %103 = vmatprep.subr.mxu0 0.0
    %104 = vmatpush2.msra.mxu0 0.0
    %105 = vmatprep.subr.mxu0 0.0
    %106 = vmatpush2.msra.mxu0 0.0
    %107 = vmatprep.subr.mxu0 0.0
    %108 = vmatpush2.msra.mxu0 0.0
    %109 = vmatprep.subr.mxu0 0.0
    %110 = vmatpush2.msra.mxu0 0.0
    %111 = vmatprep.subr.mxu0 0.0
    %112 = vmatpush2.msra.mxu0 0.0
    %113 = vmatprep.subr.mxu0 0.0
    %114 = vmatpush2.msra.mxu0 0.0
    %115 = vmatprep.subr.mxu0 0.0
    %116 = vmatpush2.msra.mxu0 0.0
    %117 = vmatprep.mubr.f32.mxu0 0.0
    %v118 = vand.u32 %v46, 4294901760
    %v119 = vsub.f32 %v46, %v118
    %v120 = vand.u32 %v119, 4294901760
    %v121 = vsub.f32 %v119, %v120
    %v122 = vand.u32 %v121, 4294901760
    %123 = vmatmul.mubr.f32.gmra.mxu0 %v122
    %v124 = vpop.f32.mrf.mxu0
    %v125 = vadd.f32 0.0, %v124
    %v126 = vpop.f32.mrf.mxu0
    %127 = vmatprep.mubr.f32.mxu0 0.0
    %v128 = vand.u32 %v49, 4294901760
    %v129 = vsub.f32 %v49, %v128
    %v130 = vand.u32 %v129, 4294901760
    %v131 = vsub.f32 %v129, %v130
    %v132 = vand.u32 %v131, 4294901760
    %133 = vmatmul.mubr.f32.gmra.mxu0 %v132
    %v134 = vpop.f32.mrf.mxu0
    %v135 = vadd.f32 0.0, %v134
    %v136 = vpop.f32.mrf.mxu0
    %137 = vdwg.mxu0
    %138 = vmatprep.subr.mxu0 0.0
    %139 = vmatpush1.msra.mxu0 0.0
    %140 = vmatprep.subr.mxu0 0.0
    %141 = vmatpush1.msra.mxu0 0.0
    %142 = vmatprep.subr.mxu0 0.0
    %143 = vmatpush1.msra.mxu0 0.0
    %144 = vmatprep.subr.mxu0 0.0
    %145 = vmatpush1.msra.mxu0 0.0
    %146 = vmatprep.subr.mxu0 0.0
    %147 = vmatpush1.msra.mxu0 0.0
    %148 = vmatprep.subr.mxu0 0.0
    %149 = vmatpush1.msra.mxu0 0.0
    %150 = vmatprep.subr.mxu0 0.0
    %151 = vmatpush1.msra.mxu0 0.0
    %152 = vmatprep.subr.mxu0 0.0
    %153 = vmatpush1.msra.mxu0 0.0
    %154 = vmatprep.subr.mxu0 0.0
    %155 = vmatpush1.msra.mxu0 0.0
    %156 = vmatprep.subr.mxu0 0.0
    %157 = vmatpush1.msra.mxu0 0.0
    %158 = vmatprep.subr.mxu0 0.0
    %159 = vmatpush1.msra.mxu0 0.0
    %160 = vmatprep.subr.mxu0 0.0
    %161 = vmatpush1.msra.mxu0 0.0
    %162 = vmatprep.subr.mxu0 0.0
    %163 = vmatpush1.msra.mxu0 0.0
    %164 = vmatprep.subr.mxu0 0.0
    %165 = vmatpush1.msra.mxu0 0.0
    %166 = vmatprep.subr.mxu0 0.0
    %v167 = vand.u32 %v43, 4294901760
    %v168 = vsub.f32 %v43, %v167
    %v169 = vand.u32 %v168, 4294901760
    %v170 = vsub.f32 %v168, %v169
    %v171 = vand.u32 %v170, 4294901760
    %172 = vmatpush1.msra.mxu0 %v171
    %173 = vmatprep.subr.mxu0 0.0
    %v174 = vand.u32 %v42, 4294901760
    %v175 = vsub.f32 %v42, %v174
    %v176 = vand.u32 %v175, 4294901760
    %v177 = vsub.f32 %v175, %v176
    %v178 = vand.u32 %v177, 4294901760
    %179 = vmatpush1.msra.mxu0 %v178
    %180 = vmatprep.subr.mxu0 0.0
    %181 = vmatpush2.msra.mxu0 0.0
    %182 = vmatprep.subr.mxu0 0.0
    %183 = vmatpush2.msra.mxu0 0.0
    %184 = vmatprep.subr.mxu0 0.0
    %185 = vmatpush2.msra.mxu0 0.0
    %186 = vmatprep.subr.mxu0 0.0
    %187 = vmatpush2.msra.mxu0 0.0
    %188 = vmatprep.subr.mxu0 0.0
    %189 = vmatpush2.msra.mxu0 0.0
    %190 = vmatprep.subr.mxu0 0.0
    %191 = vmatpush2.msra.mxu0 0.0
    %192 = vmatprep.subr.mxu0 0.0
    %193 = vmatpush2.msra.mxu0 0.0
    %194 = vmatprep.subr.mxu0 0.0
    %195 = vmatpush2.msra.mxu0 0.0
    %196 = vmatprep.subr.mxu0 0.0
    %197 = vmatpush2.msra.mxu0 0.0
    %198 = vmatprep.subr.mxu0 0.0
    %199 = vmatpush2.msra.mxu0 0.0
    %200 = vmatprep.subr.mxu0 0.0
    %201 = vmatpush2.msra.mxu0 0.0
    %202 = vmatprep.subr.mxu0 0.0
    %203 = vmatpush2.msra.mxu0 0.0
    %204 = vmatprep.subr.mxu0 0.0
    %205 = vmatpush2.msra.mxu0 0.0
    %206 = vmatprep.subr.mxu0 0.0
    %207 = vmatpush2.msra.mxu0 0.0
    %208 = vmatprep.subr.mxu0 0.0
    %209 = vmatpush2.msra.mxu0 0.0
    %210 = vmatprep.subr.mxu0 0.0
    %211 = vmatpush2.msra.mxu0 0.0
    %212 = vmatprep.mubr.f32.mxu0 0.0
    %v213 = vand.u32 %v46, 4294901760
    %214 = vmatmul.mubr.f32.gmra.mxu0 %v213
    %v215 = vpop.f32.mrf.mxu0
    %v216 = vadd.f32 %v125, %v215
    %v217 = vpop.f32.mrf.mxu0
    %218 = vmatprep.mubr.f32.mxu0 0.0
    %v219 = vand.u32 %v49, 4294901760
    %220 = vmatmul.mubr.f32.gmra.mxu0 %v219
    %v221 = vpop.f32.mrf.mxu0
    %v222 = vadd.f32 %v135, %v221
    %v223 = vpop.f32.mrf.mxu0
    %224 = vdwg.mxu0
    %225 = vmatprep.subr.mxu0 0.0
    %226 = vmatpush1.msra.mxu0 0.0
    %227 = vmatprep.subr.mxu0 0.0
    %228 = vmatpush1.msra.mxu0 0.0
    %229 = vmatprep.subr.mxu0 0.0
    %230 = vmatpush1.msra.mxu0 0.0
    %231 = vmatprep.subr.mxu0 0.0
    %232 = vmatpush1.msra.mxu0 0.0
    %233 = vmatprep.subr.mxu0 0.0
    %234 = vmatpush1.msra.mxu0 0.0
    %235 = vmatprep.subr.mxu0 0.0
    %236 = vmatpush1.msra.mxu0 0.0
    %237 = vmatprep.subr.mxu0 0.0
    %238 = vmatpush1.msra.mxu0 0.0
    %239 = vmatprep.subr.mxu0 0.0
    %240 = vmatpush1.msra.mxu0 0.0
    %241 = vmatprep.subr.mxu0 0.0
    %242 = vmatpush1.msra.mxu0 0.0
    %243 = vmatprep.subr.mxu0 0.0
    %244 = vmatpush1.msra.mxu0 0.0
    %245 = vmatprep.subr.mxu0 0.0
    %246 = vmatpush1.msra.mxu0 0.0
    %247 = vmatprep.subr.mxu0 0.0
    %248 = vmatpush1.msra.mxu0 0.0
    %249 = vmatprep.subr.mxu0 0.0
    %250 = vmatpush1.msra.mxu0 0.0
    %251 = vmatprep.subr.mxu0 0.0
    %252 = vmatpush1.msra.mxu0 0.0
    %253 = vmatprep.subr.mxu0 0.0
    %v254 = vand.u32 %v43, 4294901760
    %v255 = vsub.f32 %v43, %v254
    %256 = vmatpush1.msra.mxu0 %v255
    %257 = vmatprep.subr.mxu0 0.0
    %v258 = vand.u32 %v42, 4294901760
    %v259 = vsub.f32 %v42, %v258
    %260 = vmatpush1.msra.mxu0 %v259
    %261 = vmatprep.subr.mxu0 0.0
    %262 = vmatpush2.msra.mxu0 0.0
    %263 = vmatprep.subr.mxu0 0.0
    %264 = vmatpush2.msra.mxu0 0.0
    %265 = vmatprep.subr.mxu0 0.0
    %266 = vmatpush2.msra.mxu0 0.0
    %267 = vmatprep.subr.mxu0 0.0
    %268 = vmatpush2.msra.mxu0 0.0
    %269 = vmatprep.subr.mxu0 0.0
    %270 = vmatpush2.msra.mxu0 0.0
    %271 = vmatprep.subr.mxu0 0.0
    %272 = vmatpush2.msra.mxu0 0.0
    %273 = vmatprep.subr.mxu0 0.0
    %274 = vmatpush2.msra.mxu0 0.0
    %275 = vmatprep.subr.mxu0 0.0
    %276 = vmatpush2.msra.mxu0 0.0
    %277 = vmatprep.subr.mxu0 0.0
    %278 = vmatpush2.msra.mxu0 0.0
    %279 = vmatprep.subr.mxu0 0.0
    %280 = vmatpush2.msra.mxu0 0.0
    %281 = vmatprep.subr.mxu0 0.0
    %282 = vmatpush2.msra.mxu0 0.0
    %283 = vmatprep.subr.mxu0 0.0
    %284 = vmatpush2.msra.mxu0 0.0
    %285 = vmatprep.subr.mxu0 0.0
    %286 = vmatpush2.msra.mxu0 0.0
    %287 = vmatprep.subr.mxu0 0.0
    %288 = vmatpush2.msra.mxu0 0.0
    %289 = vmatprep.subr.mxu0 0.0
    %290 = vmatpush2.msra.mxu0 0.0
    %291 = vmatprep.subr.mxu0 0.0
    %292 = vmatpush2.msra.mxu0 0.0
    %293 = vmatprep.mubr.f32.mxu0 0.0
    %v294 = vand.u32 %v46, 4294901760
    %v295 = vsub.f32 %v46, %v294
    %296 = vmatmul.mubr.f32.gmra.mxu0 %v295
    %v297 = vpop.f32.mrf.mxu0
    %v298 = vadd.f32 %v216, %v297
    %v299 = vpop.f32.mrf.mxu0
    %300 = vmatprep.mubr.f32.mxu0 0.0
    %v301 = vand.u32 %v49, 4294901760
    %v302 = vsub.f32 %v49, %v301
    %303 = vmatmul.mubr.f32.gmra.mxu0 %v302
    %v304 = vpop.f32.mrf.mxu0
    %v305 = vadd.f32 %v222, %v304
    %v306 = vpop.f32.mrf.mxu0
    %307 = vdwg.mxu0
    %308 = vmatprep.subr.mxu0 0.0
    %309 = vmatpush1.msra.mxu0 0.0
    %310 = vmatprep.subr.mxu0 0.0
    %311 = vmatpush1.msra.mxu0 0.0
    %312 = vmatprep.subr.mxu0 0.0
    %313 = vmatpush1.msra.mxu0 0.0
    %314 = vmatprep.subr.mxu0 0.0
    %315 = vmatpush1.msra.mxu0 0.0
    %316 = vmatprep.subr.mxu0 0.0
    %317 = vmatpush1.msra.mxu0 0.0
    %318 = vmatprep.subr.mxu0 0.0
    %319 = vmatpush1.msra.mxu0 0.0
    %320 = vmatprep.subr.mxu0 0.0
    %321 = vmatpush1.msra.mxu0 0.0
    %322 = vmatprep.subr.mxu0 0.0
    %323 = vmatpush1.msra.mxu0 0.0
    %324 = vmatprep.subr.mxu0 0.0
    %325 = vmatpush1.msra.mxu0 0.0
    %326 = vmatprep.subr.mxu0 0.0
    %327 = vmatpush1.msra.mxu0 0.0
    %328 = vmatprep.subr.mxu0 0.0
    %329 = vmatpush1.msra.mxu0 0.0
    %330 = vmatprep.subr.mxu0 0.0
    %331 = vmatpush1.msra.mxu0 0.0
    %332 = vmatprep.subr.mxu0 0.0
    %333 = vmatpush1.msra.mxu0 0.0
    %334 = vmatprep.subr.mxu0 0.0
    %335 = vmatpush1.msra.mxu0 0.0
    %336 = vmatprep.subr.mxu0 0.0
    %v337 = vand.u32 %v43, 4294901760
    %338 = vmatpush1.msra.mxu0 %v337
    %339 = vmatprep.subr.mxu0 0.0
    %v340 = vand.u32 %v42, 4294901760
    %341 = vmatpush1.msra.mxu0 %v340
    %342 = vmatprep.subr.mxu0 0.0
    %343 = vmatpush2.msra.mxu0 0.0
    %344 = vmatprep.subr.mxu0 0.0
    %345 = vmatpush2.msra.mxu0 0.0
    %346 = vmatprep.subr.mxu0 0.0
    %347 = vmatpush2.msra.mxu0 0.0
    %348 = vmatprep.subr.mxu0 0.0
    %349 = vmatpush2.msra.mxu0 0.0
    %350 = vmatprep.subr.mxu0 0.0
    %351 = vmatpush2.msra.mxu0 0.0
    %352 = vmatprep.subr.mxu0 0.0
    %353 = vmatpush2.msra.mxu0 0.0
    %354 = vmatprep.subr.mxu0 0.0
    %355 = vmatpush2.msra.mxu0 0.0
    %356 = vmatprep.subr.mxu0 0.0
    %357 = vmatpush2.msra.mxu0 0.0
    %358 = vmatprep.subr.mxu0 0.0
    %359 = vmatpush2.msra.mxu0 0.0
    %360 = vmatprep.subr.mxu0 0.0
    %361 = vmatpush2.msra.mxu0 0.0
    %362 = vmatprep.subr.mxu0 0.0
    %363 = vmatpush2.msra.mxu0 0.0
    %364 = vmatprep.subr.mxu0 0.0
    %365 = vmatpush2.msra.mxu0 0.0
    %366 = vmatprep.subr.mxu0 0.0
    %367 = vmatpush2.msra.mxu0 0.0
    %368 = vmatprep.subr.mxu0 0.0
    %369 = vmatpush2.msra.mxu0 0.0
    %370 = vmatprep.subr.mxu0 0.0
    %371 = vmatpush2.msra.mxu0 0.0
    %372 = vmatprep.subr.mxu0 0.0
    %373 = vmatpush2.msra.mxu0 0.0
    %374 = vmatprep.mubr.f32.mxu0 0.0
    %v375 = vand.u32 %v46, 4294901760
    %v376 = vsub.f32 %v46, %v375
    %v377 = vand.u32 %v376, 4294901760
    %378 = vmatmul.mubr.f32.gmra.mxu0 %v377
    %v379 = vpop.f32.mrf.mxu0
    %v380 = vadd.f32 %v298, %v379
    %v381 = vpop.f32.mrf.mxu0
    %382 = vmatprep.mubr.f32.mxu0 0.0
    %v383 = vand.u32 %v49, 4294901760
    %v384 = vsub.f32 %v49, %v383
    %v385 = vand.u32 %v384, 4294901760
    %386 = vmatmul.mubr.f32.gmra.mxu0 %v385
    %v387 = vpop.f32.mrf.mxu0
    %v388 = vadd.f32 %v305, %v387
    %v389 = vpop.f32.mrf.mxu0
    %390 = vdwg.mxu0
    %391 = vmatprep.subr.mxu0 0.0
    %392 = vmatpush1.msra.mxu0 0.0
    %393 = vmatprep.subr.mxu0 0.0
    %394 = vmatpush1.msra.mxu0 0.0
    %395 = vmatprep.subr.mxu0 0.0
    %396 = vmatpush1.msra.mxu0 0.0
    %397 = vmatprep.subr.mxu0 0.0
    %398 = vmatpush1.msra.mxu0 0.0
    %399 = vmatprep.subr.mxu0 0.0
    %400 = vmatpush1.msra.mxu0 0.0
    %401 = vmatprep.subr.mxu0 0.0
    %402 = vmatpush1.msra.mxu0 0.0
    %403 = vmatprep.subr.mxu0 0.0
    %404 = vmatpush1.msra.mxu0 0.0
    %405 = vmatprep.subr.mxu0 0.0
    %406 = vmatpush1.msra.mxu0 0.0
    %407 = vmatprep.subr.mxu0 0.0
    %408 = vmatpush1.msra.mxu0 0.0
    %409 = vmatprep.subr.mxu0 0.0
    %410 = vmatpush1.msra.mxu0 0.0
    %411 = vmatprep.subr.mxu0 0.0
    %412 = vmatpush1.msra.mxu0 0.0
    %413 = vmatprep.subr.mxu0 0.0
    %414 = vmatpush1.msra.mxu0 0.0
    %415 = vmatprep.subr.mxu0 0.0
    %416 = vmatpush1.msra.mxu0 0.0
    %417 = vmatprep.subr.mxu0 0.0
    %418 = vmatpush1.msra.mxu0 0.0
    %419 = vmatprep.subr.mxu0 0.0
    %v420 = vand.u32 %v43, 4294901760
    %v421 = vsub.f32 %v43, %v420
    %v422 = vand.u32 %v421, 4294901760
    %423 = vmatpush1.msra.mxu0 %v422
    %424 = vmatprep.subr.mxu0 0.0
    %v425 = vand.u32 %v42, 4294901760
    %v426 = vsub.f32 %v42, %v425
    %v427 = vand.u32 %v426, 4294901760
    %428 = vmatpush1.msra.mxu0 %v427
    %429 = vmatprep.subr.mxu0 0.0
    %430 = vmatpush2.msra.mxu0 0.0
    %431 = vmatprep.subr.mxu0 0.0
    %432 = vmatpush2.msra.mxu0 0.0
    %433 = vmatprep.subr.mxu0 0.0
    %434 = vmatpush2.msra.mxu0 0.0
    %435 = vmatprep.subr.mxu0 0.0
    %436 = vmatpush2.msra.mxu0 0.0
    %437 = vmatprep.subr.mxu0 0.0
    %438 = vmatpush2.msra.mxu0 0.0
    %439 = vmatprep.subr.mxu0 0.0
    %440 = vmatpush2.msra.mxu0 0.0
    %441 = vmatprep.subr.mxu0 0.0
    %442 = vmatpush2.msra.mxu0 0.0
    %443 = vmatprep.subr.mxu0 0.0
    %444 = vmatpush2.msra.mxu0 0.0
    %445 = vmatprep.subr.mxu0 0.0
    %446 = vmatpush2.msra.mxu0 0.0
    %447 = vmatprep.subr.mxu0 0.0
    %448 = vmatpush2.msra.mxu0 0.0
    %449 = vmatprep.subr.mxu0 0.0
    %450 = vmatpush2.msra.mxu0 0.0
    %451 = vmatprep.subr.mxu0 0.0
    %452 = vmatpush2.msra.mxu0 0.0
    %453 = vmatprep.subr.mxu0 0.0
    %454 = vmatpush2.msra.mxu0 0.0
    %455 = vmatprep.subr.mxu0 0.0
    %456 = vmatpush2.msra.mxu0 0.0
    %457 = vmatprep.subr.mxu0 0.0
    %458 = vmatpush2.msra.mxu0 0.0
    %459 = vmatprep.subr.mxu0 0.0
    %460 = vmatpush2.msra.mxu0 0.0
    %461 = vmatprep.mubr.f32.mxu0 0.0
    %v462 = vand.u32 %v46, 4294901760
    %463 = vmatmul.mubr.f32.gmra.mxu0 %v462
    %v464 = vpop.f32.mrf.mxu0
    %v465 = vadd.f32 %v380, %v464
    %v466 = vpop.f32.mrf.mxu0
    %467 = vmatprep.mubr.f32.mxu0 0.0
    %v468 = vand.u32 %v49, 4294901760
    %469 = vmatmul.mubr.f32.gmra.mxu0 %v468
    %v470 = vpop.f32.mrf.mxu0
    %v471 = vadd.f32 %v388, %v470
    %v472 = vpop.f32.mrf.mxu0
    %473 = vdwg.mxu0
    %474 = vmatprep.subr.mxu0 0.0
    %475 = vmatpush1.msra.mxu0 0.0
    %476 = vmatprep.subr.mxu0 0.0
    %477 = vmatpush1.msra.mxu0 0.0
    %478 = vmatprep.subr.mxu0 0.0
    %479 = vmatpush1.msra.mxu0 0.0
    %480 = vmatprep.subr.mxu0 0.0
    %481 = vmatpush1.msra.mxu0 0.0
    %482 = vmatprep.subr.mxu0 0.0
    %483 = vmatpush1.msra.mxu0 0.0
    %484 = vmatprep.subr.mxu0 0.0
    %485 = vmatpush1.msra.mxu0 0.0
    %486 = vmatprep.subr.mxu0 0.0
    %487 = vmatpush1.msra.mxu0 0.0
    %488 = vmatprep.subr.mxu0 0.0
    %489 = vmatpush1.msra.mxu0 0.0
    %490 = vmatprep.subr.mxu0 0.0
    %491 = vmatpush1.msra.mxu0 0.0
    %492 = vmatprep.subr.mxu0 0.0
    %493 = vmatpush1.msra.mxu0 0.0
    %494 = vmatprep.subr.mxu0 0.0
    %495 = vmatpush1.msra.mxu0 0.0
    %496 = vmatprep.subr.mxu0 0.0
    %497 = vmatpush1.msra.mxu0 0.0
    %498 = vmatprep.subr.mxu0 0.0
    %499 = vmatpush1.msra.mxu0 0.0
    %500 = vmatprep.subr.mxu0 0.0
    %501 = vmatpush1.msra.mxu0 0.0
    %502 = vmatprep.subr.mxu0 0.0
    %v503 = vand.u32 %v43, 4294901760
    %504 = vmatpush1.msra.mxu0 %v503
    %505 = vmatprep.subr.mxu0 0.0
    %v506 = vand.u32 %v42, 4294901760
    %507 = vmatpush1.msra.mxu0 %v506
    %508 = vmatprep.subr.mxu0 0.0
    %509 = vmatpush2.msra.mxu0 0.0
    %510 = vmatprep.subr.mxu0 0.0
    %511 = vmatpush2.msra.mxu0 0.0
    %512 = vmatprep.subr.mxu0 0.0
    %513 = vmatpush2.msra.mxu0 0.0
    %514 = vmatprep.subr.mxu0 0.0
    %515 = vmatpush2.msra.mxu0 0.0
    %516 = vmatprep.subr.mxu0 0.0
    %517 = vmatpush2.msra.mxu0 0.0
    %518 = vmatprep.subr.mxu0 0.0
    %519 = vmatpush2.msra.mxu0 0.0
    %520 = vmatprep.subr.mxu0 0.0
    %521 = vmatpush2.msra.mxu0 0.0
    %522 = vmatprep.subr.mxu0 0.0
    %523 = vmatpush2.msra.mxu0 0.0
    %524 = vmatprep.subr.mxu0 0.0
    %525 = vmatpush2.msra.mxu0 0.0
    %526 = vmatprep.subr.mxu0 0.0
    %527 = vmatpush2.msra.mxu0 0.0
    %528 = vmatprep.subr.mxu0 0.0
    %529 = vmatpush2.msra.mxu0 0.0
    %530 = vmatprep.subr.mxu0 0.0
    %531 = vmatpush2.msra.mxu0 0.0
    %532 = vmatprep.subr.mxu0 0.0
    %533 = vmatpush2.msra.mxu0 0.0
    %534 = vmatprep.subr.mxu0 0.0
    %535 = vmatpush2.msra.mxu0 0.0
    %536 = vmatprep.subr.mxu0 0.0
    %537 = vmatpush2.msra.mxu0 0.0
    %538 = vmatprep.subr.mxu0 0.0
    %539 = vmatpush2.msra.mxu0 0.0
    %540 = vmatprep.mubr.f32.mxu0 0.0
    %v541 = vand.u32 %v46, 4294901760
    %542 = vmatmul.mubr.f32.gmra.mxu0 %v541
    %v543 = vpop.f32.mrf.mxu0
    %v544 = vadd.f32 %v465, %v543
    %v545 = vpop.f32.mrf.mxu0
    %546 = vmatprep.mubr.f32.mxu0 0.0
    %v547 = vand.u32 %v49, 4294901760
    %548 = vmatmul.mubr.f32.gmra.mxu0 %v547
    %v549 = vpop.f32.mrf.mxu0
    %v550 = vadd.f32 %v471, %v549
    %v551 = vpop.f32.mrf.mxu0
    %552 = vdwg.mxu0
    %553 = vst [vmem:[#allocation7] sm:$0xff] %v544
    %554 = vst [vmem:[#allocation7 + $0x8] sm:$0xff] %v550
    // Predicated region
    $region18: #{tpu_custom_call.1} parent=1 // pred_check
      _
    $region19: #{tpu_custom_call.1} parent=1 // pred_check_branch
      %556 = sbr.rel (0) target = $region21
    $region20: #{tpu_custom_call.1} parent=1 // pred_region
      %s558 = ssub.s32 256, 256
      %559 = vsyncadd [#allocation4], %s558
      %s560 = sshll.u32 [#allocation7], 4
      %s561 = int_to_ptr.vmem [resolvable:$true] %s560
      %566 = dma.vmem_to_hbm [thread:$0]  %s561, 256, %s2, [#allocation4], 128, 128, 8
    $region21: #{tpu_custom_call.1} parent=1 // pred_fallthru
      _
    // Predicated region
    $region22: #{tpu_custom_call.1} parent=1 // pred_check
      _
    $region23: #{tpu_custom_call.1} parent=1 // pred_check_branch
      %568 = sbr.rel (0) target = $region25
    $region24: #{tpu_custom_call.1} parent=1 // pred_region
      %569 = dma.done [#allocation4], 256
    $region25: #{tpu_custom_call.1} parent=1 // pred_fallthru
      _
    %570 = vsyncpa [#allocation3], 1
    %571 = vsyncpa [#allocation6], 1
    %572 = vsyncpa [#allocation4], 1

</llo_original>
